<compile_context>
chip_gen: v5e
topology: v5e:2x2
jax: 0.10.0
libtpu: 0.0.40
codegen_flags: <defaults>
</compile_context>

<pallas_src>
import jax
import jax.numpy as jnp
from jax.experimental import pallas as pl
from jax.experimental.pallas import tpu as pltpu

LANES = 128          # padded feature width (one vreg lane row)
NEG_INF = -1e30      # finite "-inf" for padded logit lanes (exp underflows to 0)

# Packed-slab row layout (all rows 128 lanes wide, f32), sections 8-sublane aligned:
#   rows   0:4    w1^T  (in=4  -> 100 outs, zero-padded to 128 lanes)
#   rows   4:8    zero padding
#   row    8      b1    (zero-padded)
#   row    9      b2    (zero-padded)
#   row   10      b3    (lanes 3..127 = NEG_INF so padded logits vanish in softmax)
#   rows  11:16   zero padding
#   rows  16:144  w2^T  (100x100 zero-padded to 128x128)
#   rows 144:272  w3^T  (100x3  zero-padded to 128x128)
W1_ROW, B_ROW, W2_ROW, W3_ROW = 0, 8, 16, 144
SLAB_ROWS = 272


def _round_up(n, m):
    return ((n + m - 1) // m) * m


def mlp_kernel(x_ref, slab_ref, out_ref):
    x = x_ref[...]                                                  # [TB, 4] f32

    # ---- fc1 + ReLU on the VPU: K=4 unrolled broadcast-FMA (no MXU pass) ----
    h1 = x[:, 0:1] * slab_ref[W1_ROW + 0:W1_ROW + 1, :]
    h1 = h1 + x[:, 1:2] * slab_ref[W1_ROW + 1:W1_ROW + 2, :]
    h1 = h1 + x[:, 2:3] * slab_ref[W1_ROW + 2:W1_ROW + 3, :]
    h1 = h1 + x[:, 3:4] * slab_ref[W1_ROW + 3:W1_ROW + 4, :]
    h1 = jnp.maximum(h1 + slab_ref[B_ROW:B_ROW + 1, :], 0.0)        # [TB, 128]

    # ---- fc2 (no activation): single lane-dense 128x128 MXU tile ----
    h2 = jnp.dot(h1, slab_ref[W2_ROW:W2_ROW + LANES, :],
                 preferred_element_type=jnp.float32)
    h2 = h2 + slab_ref[B_ROW + 1:B_ROW + 2, :]                      # [TB, 128]

    # ---- fc3: padded output lanes get NEG_INF bias -> exp() == 0 ----
    logits = jnp.dot(h2, slab_ref[W3_ROW:W3_ROW + LANES, :],
                     preferred_element_type=jnp.float32)
    logits = logits + slab_ref[B_ROW + 2:B_ROW + 3, :]              # [TB, 128]

    # ---- softmax over the feature axis (unmasked full-lane reduction) ----
    m = jnp.max(logits, axis=-1, keepdims=True)
    e = jnp.exp(logits - m)                                         # padded lanes -> 0
    denom = jnp.sum(e, axis=-1, keepdims=True)
    probs = e / denom                                               # exact f32 normalize

    # Lane-dense store: full (TB, 128) block, unmasked vst; wrapper slices [:, :3].
    out_ref[...] = probs.astype(out_ref.dtype)


def pack_params(params):
    """One-time packing: pre-transpose, pad to 128 lanes, concat into one slab."""
    w1, b1, w2, b2, w3, b3 = params            # PyTorch layout: w [out, in], b [out]
    slab = jnp.zeros((SLAB_ROWS, LANES), jnp.float32)
    slab = slab.at[W1_ROW:W1_ROW + 4, :100].set(w1.T)
    slab = slab.at[B_ROW, :100].set(b1)
    slab = slab.at[B_ROW + 1, :100].set(b2)
    slab = slab.at[B_ROW + 2, :].set(jnp.full((LANES,), NEG_INF, jnp.float32))
    slab = slab.at[B_ROW + 2, :3].set(b3)
    slab = slab.at[W2_ROW:W2_ROW + 100, :100].set(w2.T)
    slab = slab.at[W3_ROW:W3_ROW + 100, :3].set(w3.T)
    return slab


def net_forward(x, slab, *, max_tile=256):
    """Hot path: x [B,4] f32 + pre-packed param slab.

    Batch axis is tiled into TB-row blocks on a ("parallel",) grid so large B
    shards across TensorCores and pipelines x/out DMAs; the slab uses a
    constant index_map (full-array block) so it is fetched once and stays
    VMEM-resident across grid steps.
    """
    B = x.shape[0]
    TB = min(max_tile, _round_up(B, 8))         # tile rows, multiple of 8
    B_pad = _round_up(B, TB)
    if B_pad != B:
        x = jnp.pad(x, ((0, B_pad - B), (0, 0)))
    grid = (B_pad // TB,)

    flops = 2 * B_pad * (4 * 100 + 100 * 100 + 100 * 3)
    out = pl.pallas_call(
        mlp_kernel,
        out_shape=jax.ShapeDtypeStruct((B_pad, LANES), jnp.float32),
        grid_spec=pltpu.PrefetchScalarGridSpec(
            num_scalar_prefetch=0,
            grid=grid,
            in_specs=[
                pl.BlockSpec((TB, 4), lambda i: (i, 0)),             # x tile
                pl.BlockSpec((SLAB_ROWS, LANES), lambda i: (0, 0)),  # slab, pinned
            ],
            out_specs=pl.BlockSpec((TB, LANES), lambda i: (i, 0)),
        ),
        compiler_params=pltpu.CompilerParams(
            dimension_semantics=("parallel",),
        ),
        cost_estimate=pl.CostEstimate(
            flops=flops,
            transcendentals=B_pad * LANES,
            bytes_accessed=(B_pad * 4 * 4
                            + SLAB_ROWS * LANES * 4
                            + B_pad * LANES * 4),
        ),
    )(x, slab)
    return out[:B, :3]


def init_params(key):
    # Deterministic PyTorch-style init: U(-1/sqrt(fan_in), 1/sqrt(fan_in))
    def linear(key, fan_in, fan_out):
        kw, kb = jax.random.split(key)
        bound = 1.0 / (fan_in ** 0.5)
        w = jax.random.uniform(kw, (fan_out, fan_in), jnp.float32, -bound, bound)
        b = jax.random.uniform(kb, (fan_out,), jnp.float32, -bound, bound)
        return w, b

    k1, k2, k3 = jax.random.split(key, 3)
    w1, b1 = linear(k1, 4, 100)
    w2, b2 = linear(k2, 100, 100)
    w3, b3 = linear(k3, 100, 3)
    return (w1, b1, w2, b2, w3, b3)


def reference_forward(x, params):
    w1, b1, w2, b2, w3, b3 = params
    h = jnp.maximum(x @ w1.T + b1, 0.0)
    h = h @ w2.T + b2
    logits = h @ w3.T + b3
    return jax.nn.softmax(logits, axis=1)


if __name__ == "__main__":
    key = jax.random.PRNGKey(0)
    kx, kx2, kp = jax.random.split(key, 3)

    params = init_params(kp)
    slab = jax.block_until_ready(pack_params(params))    # one-time, off the hot path

    # Small batch (single tile, grid=(1,)).
    B = 8
    x = jax.random.normal(kx, (B, 4), dtype=jnp.float32)
    out = jax.block_until_ready(net_forward(x, slab))
    ref = reference_forward(x, params)
    assert out.shape == (B, 3)
    assert jnp.allclose(out, ref, atol=1e-4, rtol=1e-4), "mismatch vs JAX reference (B=8)"
    assert jnp.allclose(jnp.sum(out, axis=1), 1.0, atol=1e-4), "softmax rows must sum to 1"

    # Larger / ragged batch exercises row padding + the multi-tile parallel grid.
    B2 = 300
    x2 = jax.random.normal(kx2, (B2, 4), dtype=jnp.float32)
    out2 = jax.block_until_ready(net_forward(x2, slab))
    ref2 = reference_forward(x2, params)
    assert out2.shape == (B2, 3)
    assert jnp.allclose(out2, ref2, atol=1e-4, rtol=1e-4), "mismatch vs JAX reference (B=300)"
    assert jnp.allclose(jnp.sum(out2, axis=1), 1.0, atol=1e-4), "softmax rows must sum to 1"

    print("KERNEL_OK")
</pallas_src>

<mosaic_0001>
module attributes {stable_mosaic.version = 11 : i64} {
  func.func @mlp_kernel(%arg0: i32, %arg1: memref<8x4xf32, #tpu.memory_space<vmem>>, %arg2: memref<272x128xf32, #tpu.memory_space<vmem>>, %arg3: memref<8x128xf32, #tpu.memory_space<vmem>>) attributes {dimension_semantics = [#tpu.dimension_semantics<parallel>], iteration_bounds = array<i64: 1>, scalar_prefetch = 0 : i64, scratch_operands = 0 : i64, tpu.core_type = #tpu.core_type<tc>, window_params = [{transform_indices = @transform_0, window_bounds = array<i64: 8, 4>}, {pipeline_mode = #tpu.pipeline_mode<synchronous>, transform_indices = @transform_1, window_bounds = array<i64: 272, 128>}, {transform_indices = @transform_2, window_bounds = array<i64: 8, 128>}]} {
    %c0 = arith.constant 0 : index
    %c0_0 = arith.constant 0 : index
    %0 = vector.load %arg1[%c0, %c0_0] : memref<8x4xf32, #tpu.memory_space<vmem>>, vector<8x4xf32>
    %1 = vector.extract_strided_slice %0 {offsets = [0, 0], sizes = [8, 1], strides = [1, 1]} : vector<8x4xf32> to vector<8x1xf32>
    %c0_1 = arith.constant 0 : index
    %c0_2 = arith.constant 0 : index
    %2 = vector.load %arg2[%c0_1, %c0_2] : memref<272x128xf32, #tpu.memory_space<vmem>>, vector<1x128xf32>
    %3 = vector.broadcast %1 : vector<8x1xf32> to vector<8x128xf32>
    %4 = vector.broadcast %2 : vector<1x128xf32> to vector<8x128xf32>
    %5 = arith.mulf %3, %4 : vector<8x128xf32>
    %6 = vector.extract_strided_slice %0 {offsets = [0, 1], sizes = [8, 1], strides = [1, 1]} : vector<8x4xf32> to vector<8x1xf32>
    %c1 = arith.constant 1 : index
    %c0_3 = arith.constant 0 : index
    %7 = vector.load %arg2[%c1, %c0_3] : memref<272x128xf32, #tpu.memory_space<vmem>>, vector<1x128xf32>
    %8 = vector.broadcast %6 : vector<8x1xf32> to vector<8x128xf32>
    %9 = vector.broadcast %7 : vector<1x128xf32> to vector<8x128xf32>
    %10 = arith.mulf %8, %9 : vector<8x128xf32>
    %11 = arith.addf %5, %10 : vector<8x128xf32>
    %12 = vector.extract_strided_slice %0 {offsets = [0, 2], sizes = [8, 1], strides = [1, 1]} : vector<8x4xf32> to vector<8x1xf32>
    %c2 = arith.constant 2 : index
    %c0_4 = arith.constant 0 : index
    %13 = vector.load %arg2[%c2, %c0_4] : memref<272x128xf32, #tpu.memory_space<vmem>>, vector<1x128xf32>
    %14 = vector.broadcast %12 : vector<8x1xf32> to vector<8x128xf32>
    %15 = vector.broadcast %13 : vector<1x128xf32> to vector<8x128xf32>
    %16 = arith.mulf %14, %15 : vector<8x128xf32>
    %17 = arith.addf %11, %16 : vector<8x128xf32>
    %18 = vector.extract_strided_slice %0 {offsets = [0, 3], sizes = [8, 1], strides = [1, 1]} : vector<8x4xf32> to vector<8x1xf32>
    %c3 = arith.constant 3 : index
    %c0_5 = arith.constant 0 : index
    %19 = vector.load %arg2[%c3, %c0_5] : memref<272x128xf32, #tpu.memory_space<vmem>>, vector<1x128xf32>
    %20 = vector.broadcast %18 : vector<8x1xf32> to vector<8x128xf32>
    %21 = vector.broadcast %19 : vector<1x128xf32> to vector<8x128xf32>
    %22 = arith.mulf %20, %21 : vector<8x128xf32>
    %23 = arith.addf %17, %22 : vector<8x128xf32>
    %c8 = arith.constant 8 : index
    %c0_6 = arith.constant 0 : index
    %24 = vector.load %arg2[%c8, %c0_6] : memref<272x128xf32, #tpu.memory_space<vmem>>, vector<1x128xf32>
    %25 = vector.broadcast %24 : vector<1x128xf32> to vector<8x128xf32>
    %26 = arith.addf %23, %25 : vector<8x128xf32>
    %cst = arith.constant 0.000000e+00 : f32
    %27 = vector.broadcast %cst : f32 to vector<8x128xf32>
    %28 = arith.maximumf %26, %27 : vector<8x128xf32>
    %c16 = arith.constant 16 : index
    %c0_7 = arith.constant 0 : index
    %29 = vector.load %arg2[%c16, %c0_7] : memref<272x128xf32, #tpu.memory_space<vmem>>, vector<128x128xf32>
    %cst_8 = arith.constant dense<0.000000e+00> : vector<8x128xf32>
    %30 = tpu.matmul %28, %29, %cst_8 {dimension_numbers = #tpu.dot_dimension_numbers<[1], [0], [0], [1], [0, 0, 1, 1], [], []>} : vector<8x128xf32>, vector<128x128xf32>, vector<8x128xf32> -> vector<8x128xf32>
    %c9 = arith.constant 9 : index
    %c0_9 = arith.constant 0 : index
    %31 = vector.load %arg2[%c9, %c0_9] : memref<272x128xf32, #tpu.memory_space<vmem>>, vector<1x128xf32>
    %32 = vector.broadcast %31 : vector<1x128xf32> to vector<8x128xf32>
    %33 = arith.addf %30, %32 : vector<8x128xf32>
    %c144 = arith.constant 144 : index
    %c0_10 = arith.constant 0 : index
    %34 = vector.load %arg2[%c144, %c0_10] : memref<272x128xf32, #tpu.memory_space<vmem>>, vector<128x128xf32>
    %cst_11 = arith.constant dense<0.000000e+00> : vector<8x128xf32>
    %35 = tpu.matmul %33, %34, %cst_11 {dimension_numbers = #tpu.dot_dimension_numbers<[1], [0], [0], [1], [0, 0, 1, 1], [], []>} : vector<8x128xf32>, vector<128x128xf32>, vector<8x128xf32> -> vector<8x128xf32>
    %c10 = arith.constant 10 : index
    %c0_12 = arith.constant 0 : index
    %36 = vector.load %arg2[%c10, %c0_12] : memref<272x128xf32, #tpu.memory_space<vmem>>, vector<1x128xf32>
    %37 = vector.broadcast %36 : vector<1x128xf32> to vector<8x128xf32>
    %38 = arith.addf %35, %37 : vector<8x128xf32>
    %cst_13 = arith.constant dense<0xFF800000> : vector<8xf32>
    %39 = vector.multi_reduction <maximumf>, %38, %cst_13 [1] : vector<8x128xf32> to vector<8xf32>
    %40 = vector.shape_cast %39 : vector<8xf32> to vector<8x1xf32>
    %41 = vector.broadcast %40 : vector<8x1xf32> to vector<8x128xf32>
    %42 = arith.subf %38, %41 : vector<8x128xf32>
    %43 = math.exp %42 : vector<8x128xf32>
    %cst_14 = arith.constant dense<0.000000e+00> : vector<8xf32>
    %44 = vector.multi_reduction <add>, %43, %cst_14 [1] : vector<8x128xf32> to vector<8xf32>
    %45 = vector.shape_cast %44 : vector<8xf32> to vector<8x1xf32>
    %46 = vector.broadcast %45 : vector<8x1xf32> to vector<8x128xf32>
    %47 = arith.divf %43, %46 : vector<8x128xf32>
    %c0_15 = arith.constant 0 : index
    %c0_16 = arith.constant 0 : index
    %48 = vector.load %arg3[%c0_15, %c0_16] : memref<8x128xf32, #tpu.memory_space<vmem>>, vector<8x128xf32>
    tpu.vector_store %arg3[%c0_15, %c0_16], %47 {strides = array<i32>} : memref<8x128xf32, #tpu.memory_space<vmem>>, vector<8x128xf32>,
    return
  }
  func.func @transform_0(%arg0: i32) -> (i32, i32) {
    %c0_i32 = arith.constant 0 : i32
    %c0_i32_0 = arith.constant 0 : i32
    return %arg0, %c0_i32 : i32, i32
  }
  func.func @transform_1(%arg0: i32) -> (i32, i32) {
    %c0_i32 = arith.constant 0 : i32
    %c0_i32_0 = arith.constant 0 : i32
    %c0_i32_1 = arith.constant 0 : i32
    return %c0_i32, %c0_i32_0 : i32, i32
  }
  func.func @transform_2(%arg0: i32) -> (i32, i32) {
    %c0_i32 = arith.constant 0 : i32
    %c0_i32_0 = arith.constant 0 : i32
    return %arg0, %c0_i32 : i32, i32
  }
}

</mosaic_0001>

<llo_original>
// kernel: tpu_custom_call.1
$region0: #{tpu_custom_call.1}
  #allocation0 [shape = 'u32[]', space=smem, size = 0x4, offset = 0x4, fixed_abs, tag = 'smem constant byte address 0x4 - core index']
  #allocation1 [shape = 'u32[72,128]{1,0:T(1,128)}', space=vmem, size = 0x9000, scoped, tag = 'internal scratch']
  %s0 = inlined_call_operand.vmem [shape: f32[8,4], index: 0, kind: input, shape index: {}]
  %s1 = inlined_call_operand.hbm [shape: f32[272,128], index: 1, kind: input, shape index: {}]
  %s2 = inlined_call_operand.hbm [shape: f32[8,128], index: 2, kind: output, shape index: {}]
  %s3 = sld [smem:[#allocation0]]
  $region22: #{tpu_custom_call.1} parent=0
    _
  %s5 = ssub.s32 1, %s3
  %s6 = scalar_select 0, %s5, %s3
  $region1: #{tpu_custom_call.1} parent=0
    #allocation2 [shape = 'u8[139264]{0}', space=vmem, size = 0x22000, scoped, tag = 'input window, operand 1, single buffered']
    #allocation3 [shape = 's32[1]{0}', space=sflag, size = 0x4, scoped, tag = 'scoped memory for tpu_custom_call.1']
    #allocation4 [shape = 's32[1]{0}', space=sflag, size = 0x4, scoped, tag = 'scoped memory for tpu_custom_call.1']
    #allocation5 [shape = 'u8[4096]{0}', space=vmem, size = 0x1000, scoped, tag = 'output window, operand 0, single buffered']
    %7 = vsyncpa [#allocation3], 0
    %8 = vsyncpa [#allocation4], 0
    // Predicated region
    $region2: #{tpu_custom_call.1} parent=1 // pred_check
      _
    $region3: #{tpu_custom_call.1} parent=1 // pred_check_branch
      %10 = sbr.rel (0) target = $region5
    $region4: #{tpu_custom_call.1} parent=1 // pred_region
      _
    $region5: #{tpu_custom_call.1} parent=1 // pred_fallthru
      _
    // Predicated region
    $region6: #{tpu_custom_call.1} parent=1 // pred_check
      _
    $region7: #{tpu_custom_call.1} parent=1 // pred_check_branch
      %12 = sbr.rel (0) target = $region9
    $region8: #{tpu_custom_call.1} parent=1 // pred_region
      %14 = vsyncadd [#allocation3], 0
      %s15 = sshll.u32 %s1, 4
      %s16 = int_to_ptr.hbm [resolvable:$true] %s15
      %s17 = sshll.u32 [#allocation2], 4
      %s18 = int_to_ptr.vmem [resolvable:$true] %s17
      %23 = dma.hbm_to_vmem [thread:$0]  %s16, 4352, %s18, [#allocation3], 128, 128, 8
    $region9: #{tpu_custom_call.1} parent=1 // pred_fallthru
      _
    // Predicated region
    $region10: #{tpu_custom_call.1} parent=1 // pred_check
      _
    $region11: #{tpu_custom_call.1} parent=1 // pred_check_branch
      %25 = sbr.rel (0) target = $region13
    $region12: #{tpu_custom_call.1} parent=1 // pred_region
      %27 = dma.done [#allocation3], 4352
    $region13: #{tpu_custom_call.1} parent=1 // pred_fallthru
      _
    %v28 = vld [vmem:[%s0] sm:$0xff]
    %v29 = vld [vmem:[#allocation2] sm:$0x1]
    %31 = vset.pattern.permute.xlu0 0
    %32 = vperm.xlu0 %31, %v28
    %v33 = vpop.permute.xlu0 %32
    %v35 = vperm.slane %v29, 0
    %v36 = vmul.f32 %v33, %v35
    %v37 = vld [vmem:[#allocation2 + $0x1] sm:$0x1]
    %38 = vset.pattern.permute.xlu0 1
    %39 = vperm.xlu0 %38, %v28
    %v40 = vpop.permute.xlu0 %39
    %v42 = vperm.slane %v37, 0
    %v43 = vmul.f32 %v40, %v42
    %v44 = vadd.f32 %v36, %v43
    %v45 = vld [vmem:[#allocation2 + $0x2] sm:$0x1]
    %46 = vset.pattern.permute.xlu0 2
    %47 = vperm.xlu0 %46, %v28
    %v48 = vpop.permute.xlu0 %47
    %v50 = vperm.slane %v45, 0
    %v51 = vmul.f32 %v48, %v50
    %v52 = vadd.f32 %v44, %v51
    %v53 = vld [vmem:[#allocation2 + $0x3] sm:$0x1]
    %54 = vset.pattern.permute.xlu0 3
    %55 = vperm.xlu0 %54, %v28
    %v56 = vpop.permute.xlu0 %55
    %v58 = vperm.slane %v53, 0
    %v59 = vmul.f32 %v56, %v58
    %v60 = vadd.f32 %v52, %v59
    %v61 = vld [vmem:[#allocation2 + $0x8] sm:$0x1]
    %v62 = vperm.slane %v61, 0
    %v63 = vadd.f32 %v60, %v62
    %v64 = vmax.f32 %v63, 0.0
    %v65 = vld [vmem:[#allocation2 + $0x10] sm:$0xff]
    %v66 = vld [vmem:[#allocation2 + $0x18] sm:$0xff]
    %v67 = vld [vmem:[#allocation2 + $0x20] sm:$0xff]
    %v68 = vld [vmem:[#allocation2 + $0x28] sm:$0xff]
    %v69 = vld [vmem:[#allocation2 + $0x30] sm:$0xff]
    %v70 = vld [vmem:[#allocation2 + $0x38] sm:$0xff]
    %v71 = vld [vmem:[#allocation2 + $0x40] sm:$0xff]
    %v72 = vld [vmem:[#allocation2 + $0x48] sm:$0xff]
    %v73 = vld [vmem:[#allocation2 + $0x50] sm:$0xff]
    %v74 = vld [vmem:[#allocation2 + $0x58] sm:$0xff]
    %v75 = vld [vmem:[#allocation2 + $0x60] sm:$0xff]
    %v76 = vld [vmem:[#allocation2 + $0x68] sm:$0xff]
    %v77 = vld [vmem:[#allocation2 + $0x70] sm:$0xff]
    %v78 = vld [vmem:[#allocation2 + $0x78] sm:$0xff]
    %v79 = vld [vmem:[#allocation2 + $0x80] sm:$0xff]
    %v80 = vld [vmem:[#allocation2 + $0x88] sm:$0xff]
    %v81 = vld [vmem:[#allocation2 + $0x9] sm:$0x1]
    %v82 = vperm.slane %v81, 0
    %83 = vmatpush.msra.mxu0 %v80
    %84 = vmatpush.msra.mxu0 %v79
    %85 = vmatpush.msra.mxu0 %v78
    %86 = vmatpush.msra.mxu0 %v77
    %87 = vmatpush.msra.mxu0 %v76
    %88 = vmatpush.msra.mxu0 %v75
    %89 = vmatpush.msra.mxu0 %v74
    %90 = vmatpush.msra.mxu0 %v73
    %91 = vmatpush.msra.mxu0 %v72
    %92 = vmatpush.msra.mxu0 %v71
    %93 = vmatpush.msra.mxu0 %v70
    %94 = vmatpush.msra.mxu0 %v69
    %95 = vmatpush.msra.mxu0 %v68
    %96 = vmatpush.msra.mxu0 %v67
    %97 = vmatpush.msra.mxu0 %v66
    %98 = vmatpush.msra.mxu0 %v65
    %99 = vmatmul.f32.gmra.mxu0 %v64
    %v100 = vpop.f32.mrf.mxu0
    %v101 = vadd.f32 %v82, %v100
    %102 = vdwg.mxu0
    %v103 = vld [vmem:[#allocation2 + $0x90] sm:$0xff]
    %v104 = vld [vmem:[#allocation2 + $0x98] sm:$0xff]
    %v105 = vld [vmem:[#allocation2 + $0xa0] sm:$0xff]
    %v106 = vld [vmem:[#allocation2 + $0xa8] sm:$0xff]
    %v107 = vld [vmem:[#allocation2 + $0xb0] sm:$0xff]
    %v108 = vld [vmem:[#allocation2 + $0xb8] sm:$0xff]
    %v109 = vld [vmem:[#allocation2 + $0xc0] sm:$0xff]
    %v110 = vld [vmem:[#allocation2 + $0xc8] sm:$0xff]
    %v111 = vld [vmem:[#allocation2 + $0xd0] sm:$0xff]
    %v112 = vld [vmem:[#allocation2 + $0xd8] sm:$0xff]
    %v113 = vld [vmem:[#allocation2 + $0xe0] sm:$0xff]
    %v114 = vld [vmem:[#allocation2 + $0xe8] sm:$0xff]
    %v115 = vld [vmem:[#allocation2 + $0xf0] sm:$0xff]
    %v116 = vld [vmem:[#allocation2 + $0xf8] sm:$0xff]
    %v117 = vld [vmem:[#allocation2 + $0x100] sm:$0xff]
    %v118 = vld [vmem:[#allocation2 + $0x108] sm:$0xff]
    %v119 = vld [vmem:[#allocation2 + $0xa] sm:$0x1]
    %v120 = vperm.slane %v119, 0
    %121 = vmatpush.msra.mxu0 %v118
    %122 = vmatpush.msra.mxu0 %v117
    %123 = vmatpush.msra.mxu0 %v116
    %124 = vmatpush.msra.mxu0 %v115
    %125 = vmatpush.msra.mxu0 %v114
    %126 = vmatpush.msra.mxu0 %v113
    %127 = vmatpush.msra.mxu0 %v112
    %128 = vmatpush.msra.mxu0 %v111
    %129 = vmatpush.msra.mxu0 %v110
    %130 = vmatpush.msra.mxu0 %v109
    %131 = vmatpush.msra.mxu0 %v108
    %132 = vmatpush.msra.mxu0 %v107
    %133 = vmatpush.msra.mxu0 %v106
    %134 = vmatpush.msra.mxu0 %v105
    %135 = vmatpush.msra.mxu0 %v104
    %136 = vmatpush.msra.mxu0 %v103
    %137 = vmatmul.f32.gmra.mxu0 %v101
    %v138 = vpop.f32.mrf.mxu0
    %v139 = vadd.f32 %v120, %v138
    %140 = vdwg.mxu0
    %141 = vmax.xlane.f32.xlu0 %v139
    %v142 = vpop.xlane.xlu0 %141
    %v143 = vsub.f32 %v139, %v142
    %v144 = vmul.f32 %v143, 1.442695
    %v145 = vpow.pop %v144
    %146 = vadd.xlane.f32.xlu0 %v145
    %v147 = vpop.xlane.xlu0 %146
    %v148 = vrcp.pop %v147
    %v149 = vmul.f32 %v147, %v148
    %v150 = vsub.f32 1.0, %v149
    %v151 = vmul.f32 %v148, %v150
    %v152 = vadd.f32 %v148, %v151
    %vm153 = vweird.f32 %v147
    %vm154 = vweird.f32 %v148
    %vm155 = vmor %vm153, %vm154
    %v156 = vsel %vm155, %v148, %v152
    %v157 = vand.u32 2147483647, %v147
    %vm158 = vcmp.eq.f32.partialorder %v157, 8.507059e+37
    %v159 = vand.u32 %v147, 2147483648
    %v160 = vor.u32 1.1754944e-38, %v159
    %v161 = vsel %vm158, %v160, %v156
    %v162 = vmul.f32 %v145, %v161
    %163 = vst [vmem:[#allocation5] sm:$0xff] %v162
    // Predicated region
    $region14: #{tpu_custom_call.1} parent=1 // pred_check
      _
    $region15: #{tpu_custom_call.1} parent=1 // pred_check_branch
      %165 = sbr.rel (0) target = $region17
    $region16: #{tpu_custom_call.1} parent=1 // pred_region
      %167 = vsyncadd [#allocation4], 0
      %s169 = sshll.u32 [#allocation5], 4
      %s170 = int_to_ptr.vmem [resolvable:$true] %s169
      %s171 = sshll.u32 %s2, 4
      %s172 = int_to_ptr.hbm [resolvable:$true] %s171
      %174 = dma.vmem_to_hbm [thread:$0]  %s170, 128, %s172, [#allocation4]
    $region17: #{tpu_custom_call.1} parent=1 // pred_fallthru
      _
    // Predicated region
    $region18: #{tpu_custom_call.1} parent=1 // pred_check
      _
    $region19: #{tpu_custom_call.1} parent=1 // pred_check_branch
      %176 = sbr.rel (0) target = $region21
    $region20: #{tpu_custom_call.1} parent=1 // pred_region
      %178 = dma.done [#allocation4], 128
    $region21: #{tpu_custom_call.1} parent=1 // pred_fallthru
      _
    %179 = vsyncpa [#allocation3], 1
    %180 = vsyncpa [#allocation4], 1

</llo_original>
